<compile_context>
chip_gen: v6e
topology: v6e:2x2x1
jax: 0.10.0
libtpu: 0.0.40
codegen_flags: <defaults>
</compile_context>

<pallas_src>
import jax
import jax.numpy as jnp
from jax.experimental import pallas as pl
from jax.experimental.pallas import tpu as pltpu


def _cache_dma_copy_kernel(x_ref, o_ref, sem):
    # Single whole-array async copy (HBM->HBM for large arrays; wherever the
    # compiler placed the ANY-space buffers otherwise).  No VMEM staging, no
    # vld/vst bundles on the TensorCore — the DMA engine does all the work.
    copy = pltpu.make_async_copy(x_ref, o_ref, sem)
    copy.start()
    copy.wait()


def cache_copy(x):
    """Materialize a distinct buffer holding a bit-exact copy of x.

    One pallas_call, one DMA.  Works for any shape/dtype (no (8,128) tiling
    constraint because nothing is blocked into VMEM).
    """
    if x.size == 0:
        return x  # nothing to copy

    nbytes = x.size * jnp.dtype(x.dtype).itemsize
    return pl.pallas_call(
        _cache_dma_copy_kernel,
        out_shape=jax.ShapeDtypeStruct(x.shape, x.dtype),
        in_specs=[pl.BlockSpec(memory_space=pl.ANY)],
        out_specs=pl.BlockSpec(memory_space=pl.ANY),
        scratch_shapes=[pltpu.SemaphoreType.DMA(())],
        cost_estimate=pl.CostEstimate(
            flops=0, transcendentals=0, bytes_accessed=2 * nbytes),
    )(x)


def cache_identity(x, *, force_copy=False):
    """Tensor hot path of Cache.forward: f_i = x.

    Default is a true no-op (returns x unchanged) — the fastest possible
    implementation of an identity.  force_copy=True returns a distinct buffer
    via a single HBM->HBM DMA.
    """
    if force_copy:
        return cache_copy(x)
    return x


class Cache:
    """JAX/Pallas port of models.layers.Cache (no parameters).

    force_copy=False (default): cached entries alias x (safe — JAX arrays are
    immutable, so this matches the PyTorch reference semantics exactly).
    force_copy=True: each cached entry is a distinct HBM buffer produced by the
    DMA-copy kernel.
    """

    def __init__(self, idx=None, replace=True, inplace=False,
                 init_features=None, force_copy=False):
        self.idx = idx
        self.replace = replace
        self.inplace = inplace
        self.features = [] if init_features is None else init_features
        self.force_copy = force_copy

    def forward(self, x, features=None):
        """f_i = x"""
        if features is None:
            features = []
        if self.inplace:
            features = self.features

        x_out = cache_identity(x, force_copy=self.force_copy)

        if self.idx is not None:
            if self.replace:
                features[self.idx] = x_out
            else:
                features.insert(self.idx, x_out)
        else:
            features.append(x_out)

        if self.inplace:
            return x_out
        else:
            return (x_out, features)

    __call__ = forward


if __name__ == "__main__":
    key = jax.random.PRNGKey(0)
    x = jax.random.normal(key, (2, 4, 16, 16), dtype=jnp.float32)  # NCHW

    # 1) Default: append mode, no-op tensor path, returns (x, features).
    cache = Cache()
    x_out, feats = cache(x, features=[])
    jax.block_until_ready(x_out)
    assert x_out.shape == x.shape and x_out.dtype == x.dtype
    assert jnp.array_equal(x_out, x)
    assert len(feats) == 1 and feats[0] is x_out

    # 2) Replace mode with idx.
    cache_r = Cache(idx=0, replace=True)
    placeholder = jnp.zeros_like(x)
    x_out2, feats2 = cache_r(x, features=[placeholder])
    jax.block_until_ready(x_out2)
    assert jnp.array_equal(feats2[0], x)

    # 3) Insert mode (replace=False).
    cache_ins = Cache(idx=0, replace=False)
    x_out2b, feats2b = cache_ins(x, features=[placeholder])
    assert len(feats2b) == 2 and jnp.array_equal(feats2b[0], x)

    # 4) Inplace mode returns only x and stores into self.features.
    cache_i = Cache(inplace=True, init_features=[])
    x_out3 = cache_i(x)
    jax.block_until_ready(x_out3)
    assert jnp.array_equal(x_out3, x)
    assert len(cache_i.features) == 1

    # 5) force_copy: distinct buffer via single HBM->HBM DMA kernel.
    cache_c = Cache(force_copy=True)
    x_out4, feats4 = cache_c(x, features=[])
    jax.block_until_ready(x_out4)
    assert jnp.array_equal(x_out4, x)
    assert len(feats4) == 1

    # 6) DMA copy handles shapes whose element count is NOT a multiple of 128
    #    (the old (1, total) VMEM-fallback hazard is gone).
    x_odd = jax.random.normal(key, (3, 5, 7), dtype=jnp.float32)
    y_odd = cache_copy(x_odd)
    jax.block_until_ready(y_odd)
    assert jnp.array_equal(y_odd, x_odd)

    # 7) DMA copy on a larger lane-friendly tensor and a bf16 payload.
    x_big = jax.random.normal(key, (8, 4, 32, 128), dtype=jnp.float32)
    y_big = cache_copy(x_big)
    jax.block_until_ready(y_big)
    assert jnp.array_equal(y_big, x_big)

    x_bf16 = jax.random.normal(key, (4, 8, 16, 128), dtype=jnp.bfloat16)
    y_bf16 = cache_copy(x_bf16)
    jax.block_until_ready(y_bf16)
    assert jnp.array_equal(y_bf16, x_bf16)

    print("KERNEL_OK")
</pallas_src>

<mosaic_0001>
module attributes {stable_mosaic.version = 11 : i64} {
  func.func @_cache_dma_copy_kernel(%arg0: memref<2x4x16x16xf32, #tpu.memory_space<any>>, %arg1: memref<2x4x16x16xf32, #tpu.memory_space<any>>, %arg2: memref<!tpu.dma_semaphore, #tpu.memory_space<semaphore_mem>>) attributes {dimension_semantics = [], scalar_prefetch = 0 : i64, scratch_operands = 1 : i64, tpu.core_type = #tpu.core_type<tc>} {
    tpu.enqueue_dma source(%arg0 : memref<2x4x16x16xf32, #tpu.memory_space<any>>) target(%arg1 : memref<2x4x16x16xf32, #tpu.memory_space<any>>) target_semaphore(%arg2 : memref<!tpu.dma_semaphore, #tpu.memory_space<semaphore_mem>>)
    tpu.wait_dma2 semaphore(%arg2 : memref<!tpu.dma_semaphore, #tpu.memory_space<semaphore_mem>>) src(%arg0 : memref<2x4x16x16xf32, #tpu.memory_space<any>>) dst(%arg1 : memref<2x4x16x16xf32, #tpu.memory_space<any>>)
    return
  }
}

</mosaic_0001>

<llo_original>
// kernel: tpu_custom_call.1
$region0: #{tpu_custom_call.1}
  #allocation0 [shape = 'u32[]', space=smem, size = 0x4, offset = 0x4, fixed_abs, tag = 'smem constant byte address 0x4 - core index']
  #allocation1 [shape = 'u32[144,128]{1,0:T(1,128)}', space=vmem, size = 0x12000, scoped, tag = 'internal scratch']
  #allocation2 [shape = 's32[1]{0}', space=sflag, size = 0x4, scoped, tag = 'scratch operand']
  #allocation3 [shape = 's32[]', space=sflag, size = 0x4, offset = 0, fixed_abs, tag = 'sflag constant byte address 0x0 - dummy sync flag']
  #allocation4 [shape = 'u32[0]{0}', space=smem, size = 0, offset = 0, fixed_abs, tag = 'smem constant byte address 0x0 - null']
  %s0 = inlined_call_operand.hbm [shape: f32[2,4,16,16], index: 0, kind: input, shape index: {}]
  %s1 = inlined_call_operand.hbm [shape: f32[2,4,16,16], index: 1, kind: output, shape index: {}]
  %s2 = sld [smem:[#allocation0]]
  $region2: #{tpu_custom_call.1} parent=0
    _
  %s4 = ssub.s32 1, %s2
  %s5 = scalar_select 0, %s4, %s2
  %s7 = sshll.u32 1, 14
  %s8 = sxor.u32 4294967295, %s7
  %12 = dma.general %s0, 2048, %s1, [#allocation2], 131072, [#allocation4], 0, 0
  %s13 = smul.u32 2, 4
  %s14 = smul.u32 %s13, 16
  %s15 = smul.u32 %s14, 1
  %s16 = sshll.u32 %s15, 4
  %17 = dma.done [#allocation2], %s16
  %18 = vsyncmov [#allocation2]
  %s19 = vpop.sfrf %18
  %p20 = scmp.eq.s32.totalorder %s19, 0
  %p21 = pneg %p20
  %23 = shalt.err (%p21)

</llo_original>
